<compile_context>
chip_gen: v5e
topology: v5e:2x2
jax: 0.10.0
libtpu: 0.0.40
codegen_flags: <defaults>
</compile_context>

<pallas_src>
import jax
import jax.numpy as jnp
from jax.experimental import pallas as pl
from jax.experimental.pallas import tpu as pltpu  # noqa: F401  (TPU backend)

EPS = 1e-5
NEG_SLOPE = 0.2


def _bn_leaky(h, gamma, beta):
    """BatchNorm1d (train-mode batch stats, biased var) + LeakyReLU(0.2), f32 math."""
    mean = jnp.mean(h, axis=0, keepdims=True)
    mean_sq = jnp.mean(h * h, axis=0, keepdims=True)
    var = jnp.maximum(mean_sq - mean * mean, 0.0)   # single pass, clamp cancellation
    h = (h - mean) * jax.lax.rsqrt(var + EPS)
    h = h * gamma + beta
    return jnp.where(h > 0, h, NEG_SLOPE * h)


def decoder_kernel(x_ref,
                   w1_ref, gb1_ref,
                   w2_ref, gb2_ref,
                   w3_ref, b3_ref,
                   o_ref):
    # Activations in f32; only MXU operands are bf16.
    x = x_ref[...].astype(jnp.float32)

    # Block 1: Linear(D2 -> D1) + BN + LeakyReLU.
    # Linear bias omitted: exactly cancelled by BN's batch-mean subtraction.
    h1 = jnp.dot(x.astype(jnp.bfloat16), w1_ref[...],
                 preferred_element_type=jnp.float32)
    h1 = _bn_leaky(h1, gb1_ref[0:1, :], gb1_ref[1:2, :])

    # Block 2: Linear(D1 -> D0) + BN + LeakyReLU.
    h2 = jnp.dot(h1.astype(jnp.bfloat16), w2_ref[...],
                 preferred_element_type=jnp.float32)
    h2 = _bn_leaky(h2, gb2_ref[0:1, :], gb2_ref[1:2, :])

    # Block 3: Linear(D0 -> in_dim), bias kept (no BN after), then tanh.
    h3 = jnp.dot(h2.astype(jnp.bfloat16), w3_ref[...],
                 preferred_element_type=jnp.float32) + b3_ref[...]

    o_ref[...] = jnp.tanh(h3).astype(o_ref.dtype)


def decoder_forward(x, params):
    """x: (B, D2) f32.  params: (w1,b1,gb1,w2,b2,gb2,w3,b3); b1/b2 unused (BN cancels them)."""
    w1, _b1, gb1, w2, _b2, gb2, w3, b3 = params
    B, D2 = x.shape
    D1 = w1.shape[1]
    D0 = w2.shape[1]
    DOUT = w3.shape[1]

    full = lambda shape: pl.BlockSpec(shape, lambda: (0,) * len(shape))

    return pl.pallas_call(
        decoder_kernel,
        out_shape=jax.ShapeDtypeStruct((B, DOUT), jnp.float32),
        in_specs=[
            full((B, D2)),
            full((D2, D1)), full((2, D1)),
            full((D1, D0)), full((2, D0)),
            full((D0, DOUT)), full((1, DOUT)),
        ],
        out_specs=full((B, DOUT)),
    )(x, w1, gb1, w2, gb2, w3, b3)


def init_params(key, in_dim, out_dim):
    """Deterministic synthetic init matching Decoder.__init__ shapes.

    Weights stored in bf16 (MXU-native, halves weight DMA); gamma/beta packed as
    (2, D) per BN layer; b1/b2 returned only so the reference can include them.
    """
    D0, D1, D2 = out_dim
    ks = jax.random.split(key, 3)

    def lin(k, din, dout):
        kw, kb = jax.random.split(k)
        bound = 1.0 / jnp.sqrt(din)
        w = jax.random.uniform(kw, (din, dout), jnp.float32, -bound, bound)
        b = jax.random.uniform(kb, (1, dout), jnp.float32, -bound, bound)
        return w.astype(jnp.bfloat16), b

    w1, b1 = lin(ks[0], D2, D1)
    w2, b2 = lin(ks[1], D1, D0)
    w3, b3 = lin(ks[2], D0, in_dim)

    gb1 = jnp.concatenate([jnp.ones((1, D1), jnp.float32),
                           jnp.zeros((1, D1), jnp.float32)], axis=0)  # [gamma; beta]
    gb2 = jnp.concatenate([jnp.ones((1, D0), jnp.float32),
                           jnp.zeros((1, D0), jnp.float32)], axis=0)
    return (w1, b1, gb1, w2, b2, gb2, w3, b3)


def decoder_reference(x, params):
    """Pure-JAX reference mirroring the kernel numerics (bf16 matmul operands,
    f32 accumulation) but WITH the b1/b2 bias adds, to demonstrate that dropping
    them in the kernel is semantics-preserving under train-mode BatchNorm."""
    w1, b1, gb1, w2, b2, gb2, w3, b3 = params
    h = jnp.dot(x.astype(jnp.bfloat16), w1, preferred_element_type=jnp.float32) + b1
    h = _bn_leaky(h, gb1[0:1, :], gb1[1:2, :])
    h = jnp.dot(h.astype(jnp.bfloat16), w2, preferred_element_type=jnp.float32) + b2
    h = _bn_leaky(h, gb2[0:1, :], gb2[1:2, :])
    h = jnp.dot(h.astype(jnp.bfloat16), w3, preferred_element_type=jnp.float32) + b3
    return jnp.tanh(h)


if __name__ == "__main__":
    # Small shapes consistent with the module (scaled-down out_dim).
    in_dim = 128
    out_dim = [512, 256, 128]   # [D0, D1, D2]
    batch = 8

    key = jax.random.PRNGKey(0)
    kx, kp = jax.random.split(key)
    x = jax.random.normal(kx, (batch, out_dim[2]), jnp.float32)
    params = init_params(kp, in_dim, out_dim)

    out = decoder_forward(x, params)
    out = jax.block_until_ready(out)

    ref = decoder_reference(x, params)
    assert out.shape == (batch, in_dim)
    assert jnp.allclose(out, ref, atol=2e-3, rtol=2e-3), float(jnp.max(jnp.abs(out - ref)))

    print("KERNEL_OK")
</pallas_src>

<mosaic_0001>
module attributes {stable_mosaic.version = 11 : i64} {
  func.func @decoder_kernel(%arg0: memref<8x128xf32, #tpu.memory_space<vmem>>, %arg1: memref<128x256xbf16, #tpu.memory_space<vmem>>, %arg2: memref<2x256xf32, #tpu.memory_space<vmem>>, %arg3: memref<256x512xbf16, #tpu.memory_space<vmem>>, %arg4: memref<2x512xf32, #tpu.memory_space<vmem>>, %arg5: memref<512x128xbf16, #tpu.memory_space<vmem>>, %arg6: memref<1x128xf32, #tpu.memory_space<vmem>>, %arg7: memref<8x128xf32, #tpu.memory_space<vmem>>) attributes {dimension_semantics = [], scalar_prefetch = 0 : i64, scratch_operands = 0 : i64, tpu.core_type = #tpu.core_type<tc>} {
    %c0 = arith.constant 0 : index
    %c0_0 = arith.constant 0 : index
    %0 = vector.load %arg0[%c0, %c0_0] : memref<8x128xf32, #tpu.memory_space<vmem>>, vector<8x128xf32>
    %1 = arith.truncf %0 : vector<8x128xf32> to vector<8x128xbf16>
    %c0_1 = arith.constant 0 : index
    %c0_2 = arith.constant 0 : index
    %2 = vector.load %arg1[%c0_1, %c0_2] : memref<128x256xbf16, #tpu.memory_space<vmem>>, vector<128x256xbf16>
    %cst = arith.constant dense<0.000000e+00> : vector<8x256xf32>
    %3 = tpu.matmul %1, %2, %cst {dimension_numbers = #tpu.dot_dimension_numbers<[1], [0], [0], [1], [0, 0, 1, 1], [], []>} : vector<8x128xbf16>, vector<128x256xbf16>, vector<8x256xf32> -> vector<8x256xf32>
    %c0_3 = arith.constant 0 : index
    %c0_4 = arith.constant 0 : index
    %4 = vector.load %arg2[%c0_3, %c0_4] : memref<2x256xf32, #tpu.memory_space<vmem>>, vector<1x256xf32>
    %c1 = arith.constant 1 : index
    %c0_5 = arith.constant 0 : index
    %5 = vector.load %arg2[%c1, %c0_5] : memref<2x256xf32, #tpu.memory_space<vmem>>, vector<1x256xf32>
    %cst_6 = arith.constant dense<0.000000e+00> : vector<256xf32>
    %6 = vector.multi_reduction <add>, %3, %cst_6 [0] : vector<8x256xf32> to vector<256xf32>
    %7 = vector.shape_cast %6 : vector<256xf32> to vector<1x256xf32>
    %cst_7 = arith.constant 8.000000e+00 : f32
    %8 = vector.broadcast %cst_7 : f32 to vector<1x256xf32>
    %9 = arith.divf %7, %8 : vector<1x256xf32>
    %10 = arith.mulf %3, %3 : vector<8x256xf32>
    %cst_8 = arith.constant dense<0.000000e+00> : vector<256xf32>
    %11 = vector.multi_reduction <add>, %10, %cst_8 [0] : vector<8x256xf32> to vector<256xf32>
    %12 = vector.shape_cast %11 : vector<256xf32> to vector<1x256xf32>
    %cst_9 = arith.constant 8.000000e+00 : f32
    %13 = vector.broadcast %cst_9 : f32 to vector<1x256xf32>
    %14 = arith.divf %12, %13 : vector<1x256xf32>
    %15 = arith.mulf %9, %9 : vector<1x256xf32>
    %16 = arith.subf %14, %15 : vector<1x256xf32>
    %cst_10 = arith.constant 0.000000e+00 : f32
    %17 = vector.broadcast %cst_10 : f32 to vector<1x256xf32>
    %18 = arith.maximumf %16, %17 : vector<1x256xf32>
    %19 = vector.broadcast %9 : vector<1x256xf32> to vector<8x256xf32>
    %20 = arith.subf %3, %19 : vector<8x256xf32>
    %cst_11 = arith.constant 9.99999974E-6 : f32
    %21 = vector.broadcast %cst_11 : f32 to vector<1x256xf32>
    %22 = arith.addf %18, %21 : vector<1x256xf32>
    %23 = math.rsqrt %22 : vector<1x256xf32>
    %24 = vector.broadcast %23 : vector<1x256xf32> to vector<8x256xf32>
    %25 = arith.mulf %20, %24 : vector<8x256xf32>
    %26 = vector.broadcast %4 : vector<1x256xf32> to vector<8x256xf32>
    %27 = arith.mulf %25, %26 : vector<8x256xf32>
    %28 = vector.broadcast %5 : vector<1x256xf32> to vector<8x256xf32>
    %29 = arith.addf %27, %28 : vector<8x256xf32>
    %cst_12 = arith.constant 0.000000e+00 : f32
    %30 = vector.broadcast %cst_12 : f32 to vector<8x256xf32>
    %31 = arith.cmpf ogt, %29, %30 : vector<8x256xf32>
    %cst_13 = arith.constant 2.000000e-01 : f32
    %32 = vector.broadcast %cst_13 : f32 to vector<8x256xf32>
    %33 = arith.mulf %32, %29 : vector<8x256xf32>
    %34 = arith.select %31, %29, %33 : vector<8x256xi1>, vector<8x256xf32>
    %35 = arith.truncf %34 : vector<8x256xf32> to vector<8x256xbf16>
    %c0_14 = arith.constant 0 : index
    %c0_15 = arith.constant 0 : index
    %36 = vector.load %arg3[%c0_14, %c0_15] : memref<256x512xbf16, #tpu.memory_space<vmem>>, vector<256x512xbf16>
    %cst_16 = arith.constant dense<0.000000e+00> : vector<8x512xf32>
    %37 = tpu.matmul %35, %36, %cst_16 {dimension_numbers = #tpu.dot_dimension_numbers<[1], [0], [0], [1], [0, 0, 1, 1], [], []>} : vector<8x256xbf16>, vector<256x512xbf16>, vector<8x512xf32> -> vector<8x512xf32>
    %c0_17 = arith.constant 0 : index
    %c0_18 = arith.constant 0 : index
    %38 = vector.load %arg4[%c0_17, %c0_18] : memref<2x512xf32, #tpu.memory_space<vmem>>, vector<1x512xf32>
    %c1_19 = arith.constant 1 : index
    %c0_20 = arith.constant 0 : index
    %39 = vector.load %arg4[%c1_19, %c0_20] : memref<2x512xf32, #tpu.memory_space<vmem>>, vector<1x512xf32>
    %cst_21 = arith.constant dense<0.000000e+00> : vector<512xf32>
    %40 = vector.multi_reduction <add>, %37, %cst_21 [0] : vector<8x512xf32> to vector<512xf32>
    %41 = vector.shape_cast %40 : vector<512xf32> to vector<1x512xf32>
    %cst_22 = arith.constant 8.000000e+00 : f32
    %42 = vector.broadcast %cst_22 : f32 to vector<1x512xf32>
    %43 = arith.divf %41, %42 : vector<1x512xf32>
    %44 = arith.mulf %37, %37 : vector<8x512xf32>
    %cst_23 = arith.constant dense<0.000000e+00> : vector<512xf32>
    %45 = vector.multi_reduction <add>, %44, %cst_23 [0] : vector<8x512xf32> to vector<512xf32>
    %46 = vector.shape_cast %45 : vector<512xf32> to vector<1x512xf32>
    %cst_24 = arith.constant 8.000000e+00 : f32
    %47 = vector.broadcast %cst_24 : f32 to vector<1x512xf32>
    %48 = arith.divf %46, %47 : vector<1x512xf32>
    %49 = arith.mulf %43, %43 : vector<1x512xf32>
    %50 = arith.subf %48, %49 : vector<1x512xf32>
    %cst_25 = arith.constant 0.000000e+00 : f32
    %51 = vector.broadcast %cst_25 : f32 to vector<1x512xf32>
    %52 = arith.maximumf %50, %51 : vector<1x512xf32>
    %53 = vector.broadcast %43 : vector<1x512xf32> to vector<8x512xf32>
    %54 = arith.subf %37, %53 : vector<8x512xf32>
    %cst_26 = arith.constant 9.99999974E-6 : f32
    %55 = vector.broadcast %cst_26 : f32 to vector<1x512xf32>
    %56 = arith.addf %52, %55 : vector<1x512xf32>
    %57 = math.rsqrt %56 : vector<1x512xf32>
    %58 = vector.broadcast %57 : vector<1x512xf32> to vector<8x512xf32>
    %59 = arith.mulf %54, %58 : vector<8x512xf32>
    %60 = vector.broadcast %38 : vector<1x512xf32> to vector<8x512xf32>
    %61 = arith.mulf %59, %60 : vector<8x512xf32>
    %62 = vector.broadcast %39 : vector<1x512xf32> to vector<8x512xf32>
    %63 = arith.addf %61, %62 : vector<8x512xf32>
    %cst_27 = arith.constant 0.000000e+00 : f32
    %64 = vector.broadcast %cst_27 : f32 to vector<8x512xf32>
    %65 = arith.cmpf ogt, %63, %64 : vector<8x512xf32>
    %cst_28 = arith.constant 2.000000e-01 : f32
    %66 = vector.broadcast %cst_28 : f32 to vector<8x512xf32>
    %67 = arith.mulf %66, %63 : vector<8x512xf32>
    %68 = arith.select %65, %63, %67 : vector<8x512xi1>, vector<8x512xf32>
    %69 = arith.truncf %68 : vector<8x512xf32> to vector<8x512xbf16>
    %c0_29 = arith.constant 0 : index
    %c0_30 = arith.constant 0 : index
    %70 = vector.load %arg5[%c0_29, %c0_30] : memref<512x128xbf16, #tpu.memory_space<vmem>>, vector<512x128xbf16>
    %cst_31 = arith.constant dense<0.000000e+00> : vector<8x128xf32>
    %71 = tpu.matmul %69, %70, %cst_31 {dimension_numbers = #tpu.dot_dimension_numbers<[1], [0], [0], [1], [0, 0, 1, 1], [], []>} : vector<8x512xbf16>, vector<512x128xbf16>, vector<8x128xf32> -> vector<8x128xf32>
    %c0_32 = arith.constant 0 : index
    %c0_33 = arith.constant 0 : index
    %72 = vector.load %arg6[%c0_32, %c0_33] : memref<1x128xf32, #tpu.memory_space<vmem>>, vector<1x128xf32>
    %73 = vector.broadcast %72 : vector<1x128xf32> to vector<8x128xf32>
    %74 = arith.addf %71, %73 : vector<8x128xf32>
    %75 = math.tanh %74 : vector<8x128xf32>
    %c0_34 = arith.constant 0 : index
    %c0_35 = arith.constant 0 : index
    %76 = vector.load %arg7[%c0_34, %c0_35] : memref<8x128xf32, #tpu.memory_space<vmem>>, vector<8x128xf32>
    tpu.vector_store %arg7[%c0_34, %c0_35], %75 {strides = array<i32>} : memref<8x128xf32, #tpu.memory_space<vmem>>, vector<8x128xf32>,
    return
  }
}

</mosaic_0001>

<llo_original>
// kernel: tpu_custom_call.1
$region0: #{tpu_custom_call.1}
  #allocation0 [shape = 'u32[]', space=smem, size = 0x4, offset = 0x4, fixed_abs, tag = 'smem constant byte address 0x4 - core index']
  #allocation1 [shape = 'u32[72,128]{1,0:T(1,128)}', space=vmem, size = 0x9000, scoped, tag = 'internal scratch']
  %s0 = inlined_call_operand.hbm [shape: f32[8,128], index: 0, kind: input, shape index: {}]
  %s1 = inlined_call_operand.hbm [shape: bf16[128,256], index: 1, kind: input, shape index: {}]
  %s2 = inlined_call_operand.hbm [shape: f32[2,256], index: 2, kind: input, shape index: {}]
  %s3 = inlined_call_operand.hbm [shape: bf16[256,512], index: 3, kind: input, shape index: {}]
  %s4 = inlined_call_operand.hbm [shape: f32[2,512], index: 4, kind: input, shape index: {}]
  %s5 = inlined_call_operand.hbm [shape: bf16[512,128], index: 5, kind: input, shape index: {}]
  %s6 = inlined_call_operand.vmem [shape: f32[1,128], index: 6, kind: input, shape index: {}]
  %s7 = inlined_call_operand.hbm [shape: f32[8,128], index: 7, kind: output, shape index: {}]
  %s8 = sld [smem:[#allocation0]]
  $region62: #{tpu_custom_call.1} parent=0
    _
  %s10 = ssub.s32 1, %s8
  %s11 = scalar_select 0, %s10, %s8
  $region1: #{tpu_custom_call.1} parent=0
    #allocation2 [shape = 'u8[4096]{0}', space=vmem, size = 0x1000, scoped, tag = 'input window, operand 0, single buffered']
    #allocation3 [shape = 's32[1]{0}', space=sflag, size = 0x4, scoped, tag = 'scoped memory for tpu_custom_call.1']
    #allocation4 [shape = 's32[1]{0}', space=sflag, size = 0x4, scoped, tag = 'scoped memory for tpu_custom_call.1']
    #allocation5 [shape = 'u8[65536]{0}', space=vmem, size = 0x10000, scoped, tag = 'input window, operand 1, single buffered']
    #allocation6 [shape = 's32[1]{0}', space=sflag, size = 0x4, scoped, tag = 'scoped memory for tpu_custom_call.1']
    #allocation7 [shape = 'u8[2048]{0}', space=vmem, size = 0x800, scoped, tag = 'input window, operand 2, single buffered']
    #allocation8 [shape = 'u8[262144]{0}', space=vmem, size = 0x40000, scoped, tag = 'input window, operand 3, single buffered']
    #allocation9 [shape = 's32[1]{0}', space=sflag, size = 0x4, scoped, tag = 'scoped memory for tpu_custom_call.1']
    #allocation10 [shape = 'u8[4096]{0}', space=vmem, size = 0x1000, scoped, tag = 'input window, operand 4, single buffered']
    #allocation11 [shape = 'u8[131072]{0}', space=vmem, size = 0x20000, scoped, tag = 'input window, operand 5, single buffered']
    #allocation12 [shape = 's32[1]{0}', space=sflag, size = 0x4, scoped, tag = 'scoped memory for tpu_custom_call.1']
    #allocation13 [shape = 'u8[4096]{0}', space=vmem, size = 0x1000, scoped, tag = 'output window, operand 0, single buffered']
    %12 = vsyncpa [#allocation3], 0
    %13 = vsyncpa [#allocation6], 0
    %14 = vsyncpa [#allocation9], 0
    %15 = vsyncpa [#allocation12], 0
    %16 = vsyncpa [#allocation4], 0
    // Predicated region
    $region2: #{tpu_custom_call.1} parent=1 // pred_check
      _
    $region3: #{tpu_custom_call.1} parent=1 // pred_check_branch
      %18 = sbr.rel (0) target = $region5
    $region4: #{tpu_custom_call.1} parent=1 // pred_region
      %20 = vsyncadd [#allocation3], 0
      %s22 = sshll.u32 %s0, 4
      %s23 = int_to_ptr.hbm [resolvable:$true] %s22
      %s24 = sshll.u32 [#allocation2], 4
      %s25 = int_to_ptr.vmem [resolvable:$true] %s24
      %27 = dma.hbm_to_vmem [thread:$0]  %s23, 128, %s25, [#allocation3]
    $region5: #{tpu_custom_call.1} parent=1 // pred_fallthru
      _
    // Predicated region
    $region6: #{tpu_custom_call.1} parent=1 // pred_check
      _
    $region7: #{tpu_custom_call.1} parent=1 // pred_check_branch
      %29 = sbr.rel (0) target = $region9
    $region8: #{tpu_custom_call.1} parent=1 // pred_region
      %31 = vsyncadd [#allocation6], 0
      %s32 = sshll.u32 %s1, 4
      %s33 = int_to_ptr.hbm [resolvable:$true] %s32
      %s34 = sshll.u32 [#allocation5], 4
      %s35 = int_to_ptr.vmem [resolvable:$true] %s34
      %40 = dma.hbm_to_vmem [thread:$0]  %s33, 2048, %s35, [#allocation6], 128, 128, 8
    $region9: #{tpu_custom_call.1} parent=1 // pred_fallthru
      _
    // Predicated region
    $region10: #{tpu_custom_call.1} parent=1 // pred_check
      _
    $region11: #{tpu_custom_call.1} parent=1 // pred_check_branch
      %42 = sbr.rel (0) target = $region13
    $region12: #{tpu_custom_call.1} parent=1 // pred_region
      %44 = vsyncadd [#allocation6], 0
      %s46 = sshll.u32 %s2, 4
      %s47 = int_to_ptr.hbm [resolvable:$true] %s46
      %s48 = sshll.u32 [#allocation7], 4
      %s49 = int_to_ptr.vmem [resolvable:$true] %s48
      %51 = dma.hbm_to_vmem [thread:$0]  %s47, 64, %s49, [#allocation6]
    $region13: #{tpu_custom_call.1} parent=1 // pred_fallthru
      _
    // Predicated region
    $region14: #{tpu_custom_call.1} parent=1 // pred_check
      _
    $region15: #{tpu_custom_call.1} parent=1 // pred_check_branch
      %53 = sbr.rel (0) target = $region17
    $region16: #{tpu_custom_call.1} parent=1 // pred_region
      %55 = vsyncadd [#allocation9], 0
      %s56 = sshll.u32 %s3, 4
      %s57 = int_to_ptr.hbm [resolvable:$true] %s56
      %s58 = sshll.u32 [#allocation8], 4
      %s59 = int_to_ptr.vmem [resolvable:$true] %s58
      %64 = dma.hbm_to_vmem [thread:$0]  %s57, 8192, %s59, [#allocation9], 256, 256, 16
    $region17: #{tpu_custom_call.1} parent=1 // pred_fallthru
      _
    // Predicated region
    $region18: #{tpu_custom_call.1} parent=1 // pred_check
      _
    $region19: #{tpu_custom_call.1} parent=1 // pred_check_branch
      %66 = sbr.rel (0) target = $region21
    $region20: #{tpu_custom_call.1} parent=1 // pred_region
      %68 = vsyncadd [#allocation9], 0
      %s70 = sshll.u32 %s4, 4
      %s71 = int_to_ptr.hbm [resolvable:$true] %s70
      %s72 = sshll.u32 [#allocation10], 4
      %s73 = int_to_ptr.vmem [resolvable:$true] %s72
      %75 = dma.hbm_to_vmem [thread:$0]  %s71, 128, %s73, [#allocation9]
    $region21: #{tpu_custom_call.1} parent=1 // pred_fallthru
      _
    // Predicated region
    $region22: #{tpu_custom_call.1} parent=1 // pred_check
      _
    $region23: #{tpu_custom_call.1} parent=1 // pred_check_branch
      %77 = sbr.rel (0) target = $region25
    $region24: #{tpu_custom_call.1} parent=1 // pred_region
      %79 = vsyncadd [#allocation12], 0
      %s80 = sshll.u32 %s5, 4
      %s81 = int_to_ptr.hbm [resolvable:$true] %s80
      %s82 = sshll.u32 [#allocation11], 4
      %s83 = int_to_ptr.vmem [resolvable:$true] %s82
      %88 = dma.hbm_to_vmem [thread:$0]  %s81, 4096, %s83, [#allocation12], 64, 64, 4
    $region25: #{tpu_custom_call.1} parent=1 // pred_fallthru
      _
    // Predicated region
    $region26: #{tpu_custom_call.1} parent=1 // pred_check
      _
    $region27: #{tpu_custom_call.1} parent=1 // pred_check_branch
      %90 = sbr.rel (0) target = $region29
    $region28: #{tpu_custom_call.1} parent=1 // pred_region
      _
    $region29: #{tpu_custom_call.1} parent=1 // pred_fallthru
      _
    // Predicated region
    $region30: #{tpu_custom_call.1} parent=1 // pred_check
      _
    $region31: #{tpu_custom_call.1} parent=1 // pred_check_branch
      %92 = sbr.rel (0) target = $region33
    $region32: #{tpu_custom_call.1} parent=1 // pred_region
      %94 = dma.done [#allocation3], 128
    $region33: #{tpu_custom_call.1} parent=1 // pred_fallthru
      _
    // Predicated region
    $region34: #{tpu_custom_call.1} parent=1 // pred_check
      _
    $region35: #{tpu_custom_call.1} parent=1 // pred_check_branch
      %96 = sbr.rel (0) target = $region37
    $region36: #{tpu_custom_call.1} parent=1 // pred_region
      %98 = dma.done [#allocation6], 2048
    $region37: #{tpu_custom_call.1} parent=1 // pred_fallthru
      _
    // Predicated region
    $region38: #{tpu_custom_call.1} parent=1 // pred_check
      _
    $region39: #{tpu_custom_call.1} parent=1 // pred_check_branch
      %100 = sbr.rel (0) target = $region41
    $region40: #{tpu_custom_call.1} parent=1 // pred_region
      %102 = dma.done [#allocation6], 64
    $region41: #{tpu_custom_call.1} parent=1 // pred_fallthru
      _
    // Predicated region
    $region42: #{tpu_custom_call.1} parent=1 // pred_check
      _
    $region43: #{tpu_custom_call.1} parent=1 // pred_check_branch
      %104 = sbr.rel (0) target = $region45
    $region44: #{tpu_custom_call.1} parent=1 // pred_region
      %106 = dma.done [#allocation9], 8192
    $region45: #{tpu_custom_call.1} parent=1 // pred_fallthru
      _
    // Predicated region
    $region46: #{tpu_custom_call.1} parent=1 // pred_check
      _
    $region47: #{tpu_custom_call.1} parent=1 // pred_check_branch
      %108 = sbr.rel (0) target = $region49
    $region48: #{tpu_custom_call.1} parent=1 // pred_region
      %110 = dma.done [#allocation9], 128
    $region49: #{tpu_custom_call.1} parent=1 // pred_fallthru
      _
    // Predicated region
    $region50: #{tpu_custom_call.1} parent=1 // pred_check
      _
    $region51: #{tpu_custom_call.1} parent=1 // pred_check_branch
      %112 = sbr.rel (0) target = $region53
    $region52: #{tpu_custom_call.1} parent=1 // pred_region
      %114 = dma.done [#allocation12], 4096
    $region53: #{tpu_custom_call.1} parent=1 // pred_fallthru
      _
    %v115 = vld [vmem:[#allocation2] sm:$0xff]
    %v116 = vpack.c.bf16 %v115, %v115
    %v117 = vld [vmem:[#allocation5] sm:$0xff]
    %v118 = vld [vmem:[#allocation5 + $0x8] sm:$0xff]
    %v119 = vld [vmem:[#allocation5 + $0x10] sm:$0xff]
    %v120 = vld [vmem:[#allocation5 + $0x18] sm:$0xff]
    %v121 = vld [vmem:[#allocation5 + $0x20] sm:$0xff]
    %v122 = vld [vmem:[#allocation5 + $0x28] sm:$0xff]
    %v123 = vld [vmem:[#allocation5 + $0x30] sm:$0xff]
    %v124 = vld [vmem:[#allocation5 + $0x38] sm:$0xff]
    %v125 = vld [vmem:[#allocation5 + $0x40] sm:$0xff]
    %v126 = vld [vmem:[#allocation5 + $0x48] sm:$0xff]
    %v127 = vld [vmem:[#allocation5 + $0x50] sm:$0xff]
    %v128 = vld [vmem:[#allocation5 + $0x58] sm:$0xff]
    %v129 = vld [vmem:[#allocation5 + $0x60] sm:$0xff]
    %v130 = vld [vmem:[#allocation5 + $0x68] sm:$0xff]
    %v131 = vld [vmem:[#allocation5 + $0x70] sm:$0xff]
    %v132 = vld [vmem:[#allocation5 + $0x78] sm:$0xff]
    %v149 = vunpack.c.l.b16 %v117
    %v150 = vunpack.c.h.b16 %v117
    %v151 = vunpack.c.l.b16 %v118
    %v152 = vunpack.c.h.b16 %v118
    %v153 = vunpack.c.l.b16 %v119
    %v154 = vunpack.c.h.b16 %v119
    %v155 = vunpack.c.l.b16 %v120
    %v156 = vunpack.c.h.b16 %v120
    %v157 = vunpack.c.l.b16 %v121
    %v158 = vunpack.c.h.b16 %v121
    %v159 = vunpack.c.l.b16 %v122
    %v160 = vunpack.c.h.b16 %v122
    %v161 = vunpack.c.l.b16 %v123
    %v162 = vunpack.c.h.b16 %v123
    %v163 = vunpack.c.l.b16 %v124
    %v164 = vunpack.c.h.b16 %v124
    %v165 = vunpack.c.l.b16 %v125
    %v166 = vunpack.c.h.b16 %v125
    %v167 = vunpack.c.l.b16 %v126
    %v168 = vunpack.c.h.b16 %v126
    %v169 = vunpack.c.l.b16 %v127
    %v170 = vunpack.c.h.b16 %v127
    %v171 = vunpack.c.l.b16 %v128
    %v172 = vunpack.c.h.b16 %v128
    %v173 = vunpack.c.l.b16 %v129
    %v174 = vunpack.c.h.b16 %v129
    %v175 = vunpack.c.l.b16 %v130
    %v176 = vunpack.c.h.b16 %v130
    %v177 = vunpack.c.l.b16 %v131
    %v178 = vunpack.c.h.b16 %v131
    %v179 = vunpack.c.l.b16 %v132
    %v180 = vunpack.c.h.b16 %v132
    %v181 = vpack.c.b16 %v151, %v149
    %v182 = vpack.c.b16 %v152, %v150
    %v183 = vpack.c.b16 %v155, %v153
    %v184 = vpack.c.b16 %v156, %v154
    %v185 = vpack.c.b16 %v159, %v157
    %v186 = vpack.c.b16 %v160, %v158
    %v187 = vpack.c.b16 %v163, %v161
    %v188 = vpack.c.b16 %v164, %v162
    %v189 = vpack.c.b16 %v167, %v165
    %v190 = vpack.c.b16 %v168, %v166
    %v191 = vpack.c.b16 %v171, %v169
    %v192 = vpack.c.b16 %v172, %v170
    %v193 = vpack.c.b16 %v175, %v173
    %v194 = vpack.c.b16 %v176, %v174
    %v195 = vpack.c.b16 %v179, %v177
    %v196 = vpack.c.b16 %v180, %v178
    %213 = vmatpush.bf16.msra.mxu0 %v195
    %214 = vmatpush.bf16.msra.mxu0 %v193
    %215 = vmatpush.bf16.msra.mxu0 %v191
    %216 = vmatpush.bf16.msra.mxu0 %v189
    %217 = vmatpush.bf16.msra.mxu0 %v187
    %218 = vmatpush.bf16.msra.mxu0 %v185
    %219 = vmatpush.bf16.msra.mxu0 %v183
    %220 = vmatpush.bf16.msra.mxu0 %v181
    %221 = vmatmul.bf16.gmra.mxu0 %v116
    %v222 = vpop.f32.mrf.mxu0
    %v223 = vadd.f32 0.0, %v222
    %v224 = vpop.f32.mrf.mxu0
    %225 = vdwg.mxu0
    %226 = vmatpush.bf16.msra.mxu0 %v196
    %227 = vmatpush.bf16.msra.mxu0 %v194
    %228 = vmatpush.bf16.msra.mxu0 %v192
    %229 = vmatpush.bf16.msra.mxu0 %v190
    %230 = vmatpush.bf16.msra.mxu0 %v188
    %231 = vmatpush.bf16.msra.mxu0 %v186
    %232 = vmatpush.bf16.msra.mxu0 %v184
    %233 = vmatpush.bf16.msra.mxu0 %v182
    %234 = vmatmul.bf16.gmra.mxu0 %v116
    %v235 = vpop.f32.mrf.mxu0
    %v236 = vadd.f32 0.0, %v235
    %v237 = vpop.f32.mrf.mxu0
    %238 = vdwg.mxu0
    %v239 = vld [vmem:[#allocation7] ss:$2 sm:$0x3]
    %s240 = scalar_lea.vmem [#allocation7], 1
    %v241 = vld [vmem:[%s240] ss:$2 sm:$0x3]
    %v242 = vrot.slane %v223, 4
    %v243 = vadd.f32 %v223, %v242
    %v244 = vrot.slane %v243, 2
    %v245 = vadd.f32 %v243, %v244
    %v246 = vrot.slane %v245, 1
    %v247 = vadd.f32 %v245, %v246
    %v248 = vrot.slane %v236, 4
    %v249 = vadd.f32 %v236, %v248
    %v250 = vrot.slane %v249, 2
    %v251 = vadd.f32 %v249, %v250
    %v252 = vrot.slane %v251, 1
    %v253 = vadd.f32 %v251, %v252
    %v254 = vrcp.pop 8.0
    %v255 = vmul.f32 8.0, %v254
    %v256 = vsub.f32 1.0, %v255
    %v257 = vmul.f32 %v254, %v256
    %v258 = vadd.f32 %v254, %v257
    %vm259 = vweird.f32 %v254
    %v260 = vsel %vm259, %v254, %v258
    %v261 = vmul.f32 %v247, %v260
    %v262 = vmul.f32 %v253, %v260
    %v263 = vmul.f32 %v223, %v223
    %v264 = vmul.f32 %v236, %v236
    %v265 = vrot.slane %v263, 4
    %v266 = vadd.f32 %v263, %v265
    %v267 = vrot.slane %v266, 2
    %v268 = vadd.f32 %v266, %v267
    %v269 = vrot.slane %v268, 1
    %v270 = vadd.f32 %v268, %v269
    %v271 = vrot.slane %v264, 4
    %v272 = vadd.f32 %v264, %v271
    %v273 = vrot.slane %v272, 2
    %v274 = vadd.f32 %v272, %v273
    %v275 = vrot.slane %v274, 1
    %v276 = vadd.f32 %v274, %v275
    %v277 = vmul.f32 %v270, %v260
    %v278 = vmul.f32 %v276, %v260
    %v279 = vmul.f32 %v261, %v261
    %v280 = vmul.f32 %v262, %v262
    %v281 = vsub.f32 %v277, %v279
    %v282 = vsub.f32 %v278, %v280
    %v283 = vmax.f32 %v281, 0.0
    %v284 = vmax.f32 %v282, 0.0
    %v285 = vsub.f32 %v223, %v261
    %v286 = vsub.f32 %v236, %v262
    %v287 = vadd.f32 %v283, 1e-05
    %v288 = vadd.f32 %v284, 1e-05
    %v289 = vrsqrt.pop %v287
    %v290 = vmul.f32 %v289, %v287
    %v291 = vmul.f32 %v290, %v289
    %v292 = vmul.f32 0.5, %v291
    %v293 = vsub.f32 1.5, %v292
    %v294 = vmul.f32 %v289, %v293
    %vm295 = vweird.f32 %v287
    %vm296 = vweird.f32 %v289
    %vm297 = vmor %vm295, %vm296
    %v298 = vsel %vm297, %v289, %v294
    %v299 = vrsqrt.pop %v288
    %v300 = vmul.f32 %v299, %v288
    %v301 = vmul.f32 %v300, %v299
    %v302 = vmul.f32 0.5, %v301
    %v303 = vsub.f32 1.5, %v302
    %v304 = vmul.f32 %v299, %v303
    %vm305 = vweird.f32 %v288
    %vm306 = vweird.f32 %v299
    %vm307 = vmor %vm305, %vm306
    %v308 = vsel %vm307, %v299, %v304
    %v309 = vmul.f32 %v285, %v298
    %v310 = vmul.f32 %v286, %v308
    %v312 = vperm.slane %v239, 0
    %v313 = vperm.slane %v239, 1
    %v316 = vmul.f32 %v309, %v312
    %v317 = vmul.f32 %v310, %v313
    %v319 = vperm.slane %v241, 0
    %v320 = vperm.slane %v241, 1
    %v323 = vadd.f32 %v316, %v319
    %v324 = vadd.f32 %v317, %v320
    %vm325 = vcmp.gt.f32.partialorder %v323, 0.0
    %vm326 = vcmp.gt.f32.partialorder %v324, 0.0
    %v327 = vmul.f32 %v323, 0.2
    %v328 = vmul.f32 %v324, 0.2
    %v329 = vsel %vm325, %v323, %v327
    %v330 = vsel %vm326, %v324, %v328
    %v331 = vpack.c.bf16 %v329, %v329
    %v332 = vpack.c.bf16 %v330, %v330
    %v333 = vld [vmem:[#allocation8] sm:$0xff]
    %v334 = vld [vmem:[#allocation8 + $0x8] sm:$0xff]
    %v335 = vld [vmem:[#allocation8 + $0x10] sm:$0xff]
    %v336 = vld [vmem:[#allocation8 + $0x18] sm:$0xff]
    %v337 = vld [vmem:[#allocation8 + $0x20] sm:$0xff]
    %v338 = vld [vmem:[#allocation8 + $0x28] sm:$0xff]
    %v339 = vld [vmem:[#allocation8 + $0x30] sm:$0xff]
    %v340 = vld [vmem:[#allocation8 + $0x38] sm:$0xff]
    %v341 = vld [vmem:[#allocation8 + $0x40] sm:$0xff]
    %v342 = vld [vmem:[#allocation8 + $0x48] sm:$0xff]
    %v343 = vld [vmem:[#allocation8 + $0x50] sm:$0xff]
    %v344 = vld [vmem:[#allocation8 + $0x58] sm:$0xff]
    %v345 = vld [vmem:[#allocation8 + $0x60] sm:$0xff]
    %v346 = vld [vmem:[#allocation8 + $0x68] sm:$0xff]
    %v347 = vld [vmem:[#allocation8 + $0x70] sm:$0xff]
    %v348 = vld [vmem:[#allocation8 + $0x78] sm:$0xff]
    %v349 = vld [vmem:[#allocation8 + $0x80] sm:$0xff]
    %v350 = vld [vmem:[#allocation8 + $0x88] sm:$0xff]
    %v351 = vld [vmem:[#allocation8 + $0x90] sm:$0xff]
    %v352 = vld [vmem:[#allocation8 + $0x98] sm:$0xff]
    %v353 = vld [vmem:[#allocation8 + $0xa0] sm:$0xff]
    %v354 = vld [vmem:[#allocation8 + $0xa8] sm:$0xff]
    %v355 = vld [vmem:[#allocation8 + $0xb0] sm:$0xff]
    %v356 = vld [vmem:[#allocation8 + $0xb8] sm:$0xff]
    %v357 = vld [vmem:[#allocation8 + $0xc0] sm:$0xff]
    %v358 = vld [vmem:[#allocation8 + $0xc8] sm:$0xff]
    %v359 = vld [vmem:[#allocation8 + $0xd0] sm:$0xff]
    %v360 = vld [vmem:[#allocation8 + $0xd8] sm:$0xff]
    %v361 = vld [vmem:[#allocation8 + $0xe0] sm:$0xff]
    %v362 = vld [vmem:[#allocation8 + $0xe8] sm:$0xff]
    %v363 = vld [vmem:[#allocation8 + $0xf0] sm:$0xff]
    %v364 = vld [vmem:[#allocation8 + $0xf8] sm:$0xff]
    %v365 = vld [vmem:[#allocation8 + $0x100] sm:$0xff]
    %v366 = vld [vmem:[#allocation8 + $0x108] sm:$0xff]
    %v367 = vld [vmem:[#allocation8 + $0x110] sm:$0xff]
    %v368 = vld [vmem:[#allocation8 + $0x118] sm:$0xff]
    %v369 = vld [vmem:[#allocation8 + $0x120] sm:$0xff]
    %v370 = vld [vmem:[#allocation8 + $0x128] sm:$0xff]
    %v371 = vld [vmem:[#allocation8 + $0x130] sm:$0xff]
    %v372 = vld [vmem:[#allocation8 + $0x138] sm:$0xff]
    %v373 = vld [vmem:[#allocation8 + $0x140] sm:$0xff]
    %v374 = vld [vmem:[#allocation8 + $0x148] sm:$0xff]
    %v375 = vld [vmem:[#allocation8 + $0x150] sm:$0xff]
    %v376 = vld [vmem:[#allocation8 + $0x158] sm:$0xff]
    %v377 = vld [vmem:[#allocation8 + $0x160] sm:$0xff]
    %v378 = vld [vmem:[#allocation8 + $0x168] sm:$0xff]
    %v379 = vld [vmem:[#allocation8 + $0x170] sm:$0xff]
    %v380 = vld [vmem:[#allocation8 + $0x178] sm:$0xff]
    %v381 = vld [vmem:[#allocation8 + $0x180] sm:$0xff]
    %v382 = vld [vmem:[#allocation8 + $0x188] sm:$0xff]
    %v383 = vld [vmem:[#allocation8 + $0x190] sm:$0xff]
    %v384 = vld [vmem:[#allocation8 + $0x198] sm:$0xff]
    %v385 = vld [vmem:[#allocation8 + $0x1a0] sm:$0xff]
    %v386 = vld [vmem:[#allocation8 + $0x1a8] sm:$0xff]
    %v387 = vld [vmem:[#allocation8 + $0x1b0] sm:$0xff]
    %v388 = vld [vmem:[#allocation8 + $0x1b8] sm:$0xff]
    %v389 = vld [vmem:[#allocation8 + $0x1c0] sm:$0xff]
    %v390 = vld [vmem:[#allocation8 + $0x1c8] sm:$0xff]
    %v391 = vld [vmem:[#allocation8 + $0x1d0] sm:$0xff]
    %v392 = vld [vmem:[#allocation8 + $0x1d8] sm:$0xff]
    %v393 = vld [vmem:[#allocation8 + $0x1e0] sm:$0xff]
    %v394 = vld [vmem:[#allocation8 + $0x1e8] sm:$0xff]
    %v395 = vld [vmem:[#allocation8 + $0x1f0] sm:$0xff]
    %v396 = vld [vmem:[#allocation8 + $0x1f8] sm:$0xff]
    %v461 = vunpack.c.l.b16 %v333
    %v462 = vunpack.c.h.b16 %v333
    %v463 = vunpack.c.l.b16 %v334
    %v464 = vunpack.c.h.b16 %v334
    %v465 = vunpack.c.l.b16 %v335
    %v466 = vunpack.c.h.b16 %v335
    %v467 = vunpack.c.l.b16 %v336
    %v468 = vunpack.c.h.b16 %v336
    %v469 = vunpack.c.l.b16 %v337
    %v470 = vunpack.c.h.b16 %v337
    %v471 = vunpack.c.l.b16 %v338
    %v472 = vunpack.c.h.b16 %v338
    %v473 = vunpack.c.l.b16 %v339
    %v474 = vunpack.c.h.b16 %v339
    %v475 = vunpack.c.l.b16 %v340
    %v476 = vunpack.c.h.b16 %v340
    %v477 = vunpack.c.l.b16 %v341
    %v478 = vunpack.c.h.b16 %v341
    %v479 = vunpack.c.l.b16 %v342
    %v480 = vunpack.c.h.b16 %v342
    %v481 = vunpack.c.l.b16 %v343
    %v482 = vunpack.c.h.b16 %v343
    %v483 = vunpack.c.l.b16 %v344
    %v484 = vunpack.c.h.b16 %v344
    %v485 = vunpack.c.l.b16 %v345
    %v486 = vunpack.c.h.b16 %v345
    %v487 = vunpack.c.l.b16 %v346
    %v488 = vunpack.c.h.b16 %v346
    %v489 = vunpack.c.l.b16 %v347
    %v490 = vunpack.c.h.b16 %v347
    %v491 = vunpack.c.l.b16 %v348
    %v492 = vunpack.c.h.b16 %v348
    %v493 = vunpack.c.l.b16 %v349
    %v494 = vunpack.c.h.b16 %v349
    %v495 = vunpack.c.l.b16 %v350
    %v496 = vunpack.c.h.b16 %v350
    %v497 = vunpack.c.l.b16 %v351
    %v498 = vunpack.c.h.b16 %v351
    %v499 = vunpack.c.l.b16 %v352
    %v500 = vunpack.c.h.b16 %v352
    %v501 = vunpack.c.l.b16 %v353
    %v502 = vunpack.c.h.b16 %v353
    %v503 = vunpack.c.l.b16 %v354
    %v504 = vunpack.c.h.b16 %v354
    %v505 = vunpack.c.l.b16 %v355
    %v506 = vunpack.c.h.b16 %v355
    %v507 = vunpack.c.l.b16 %v356
    %v508 = vunpack.c.h.b16 %v356
    %v509 = vunpack.c.l.b16 %v357
    %v510 = vunpack.c.h.b16 %v357
    %v511 = vunpack.c.l.b16 %v358
    %v512 = vunpack.c.h.b16 %v358
    %v513 = vunpack.c.l.b16 %v359
    %v514 = vunpack.c.h.b16 %v359
    %v515 = vunpack.c.l.b16 %v360
    %v516 = vunpack.c.h.b16 %v360
    %v517 = vunpack.c.l.b16 %v361
    %v518 = vunpack.c.h.b16 %v361
    %v519 = vunpack.c.l.b16 %v362
    %v520 = vunpack.c.h.b16 %v362
    %v521 = vunpack.c.l.b16 %v363
    %v522 = vunpack.c.h.b16 %v363
    %v523 = vunpack.c.l.b16 %v364
    %v524 = vunpack.c.h.b16 %v364
    %v525 = vunpack.c.l.b16 %v365
    %v526 = vunpack.c.h.b16 %v365
    %v527 = vunpack.c.l.b16 %v366
    %v528 = vunpack.c.h.b16 %v366
    %v529 = vunpack.c.l.b16 %v367
    %v530 = vunpack.c.h.b16 %v367
    %v531 = vunpack.c.l.b16 %v368
    %v532 = vunpack.c.h.b16 %v368
    %v533 = vunpack.c.l.b16 %v369
    %v534 = vunpack.c.h.b16 %v369
    %v535 = vunpack.c.l.b16 %v370
    %v536 = vunpack.c.h.b16 %v370
    %v537 = vunpack.c.l.b16 %v371
    %v538 = vunpack.c.h.b16 %v371
    %v539 = vunpack.c.l.b16 %v372
    %v540 = vunpack.c.h.b16 %v372
    %v541 = vunpack.c.l.b16 %v373
    %v542 = vunpack.c.h.b16 %v373
    %v543 = vunpack.c.l.b16 %v374
    %v544 = vunpack.c.h.b16 %v374
    %v545 = vunpack.c.l.b16 %v375
    %v546 = vunpack.c.h.b16 %v375
    %v547 = vunpack.c.l.b16 %v376
    %v548 = vunpack.c.h.b16 %v376
    %v549 = vunpack.c.l.b16 %v377
    %v550 = vunpack.c.h.b16 %v377
    %v551 = vunpack.c.l.b16 %v378
    %v552 = vunpack.c.h.b16 %v378
    %v553 = vunpack.c.l.b16 %v379
    %v554 = vunpack.c.h.b16 %v379
    %v555 = vunpack.c.l.b16 %v380
    %v556 = vunpack.c.h.b16 %v380
    %v557 = vunpack.c.l.b16 %v381
    %v558 = vunpack.c.h.b16 %v381
    %v559 = vunpack.c.l.b16 %v382
    %v560 = vunpack.c.h.b16 %v382
    %v561 = vunpack.c.l.b16 %v383
    %v562 = vunpack.c.h.b16 %v383
    %v563 = vunpack.c.l.b16 %v384
    %v564 = vunpack.c.h.b16 %v384
    %v565 = vunpack.c.l.b16 %v385
    %v566 = vunpack.c.h.b16 %v385
    %v567 = vunpack.c.l.b16 %v386
    %v568 = vunpack.c.h.b16 %v386
    %v569 = vunpack.c.l.b16 %v387
    %v570 = vunpack.c.h.b16 %v387
    %v571 = vunpack.c.l.b16 %v388
    %v572 = vunpack.c.h.b16 %v388
    %v573 = vunpack.c.l.b16 %v389
    %v574 = vunpack.c.h.b16 %v389
    %v575 = vunpack.c.l.b16 %v390
    %v576 = vunpack.c.h.b16 %v390
    %v577 = vunpack.c.l.b16 %v391
    %v578 = vunpack.c.h.b16 %v391
    %v579 = vunpack.c.l.b16 %v392
    %v580 = vunpack.c.h.b16 %v392
    %v581 = vunpack.c.l.b16 %v393
    %v582 = vunpack.c.h.b16 %v393
    %v583 = vunpack.c.l.b16 %v394
    %v584 = vunpack.c.h.b16 %v394
    %v585 = vunpack.c.l.b16 %v395
    %v586 = vunpack.c.h.b16 %v395
    %v587 = vunpack.c.l.b16 %v396
    %v588 = vunpack.c.h.b16 %v396
    %v589 = vpack.c.b16 %v465, %v461
    %v590 = vpack.c.b16 %v466, %v462
    %v591 = vpack.c.b16 %v467, %v463
    %v592 = vpack.c.b16 %v468, %v464
    %v593 = vpack.c.b16 %v473, %v469
    %v594 = vpack.c.b16 %v474, %v470
    %v595 = vpack.c.b16 %v475, %v471
    %v596 = vpack.c.b16 %v476, %v472
    %v597 = vpack.c.b16 %v481, %v477
    %v598 = vpack.c.b16 %v482, %v478
    %v599 = vpack.c.b16 %v483, %v479
    %v600 = vpack.c.b16 %v484, %v480
    %v601 = vpack.c.b16 %v489, %v485
    %v602 = vpack.c.b16 %v490, %v486
    %v603 = vpack.c.b16 %v491, %v487
    %v604 = vpack.c.b16 %v492, %v488
    %v605 = vpack.c.b16 %v497, %v493
    %v606 = vpack.c.b16 %v498, %v494
    %v607 = vpack.c.b16 %v499, %v495
    %v608 = vpack.c.b16 %v500, %v496
    %v609 = vpack.c.b16 %v505, %v501
    %v610 = vpack.c.b16 %v506, %v502
    %v611 = vpack.c.b16 %v507, %v503
    %v612 = vpack.c.b16 %v508, %v504
    %v613 = vpack.c.b16 %v513, %v509
    %v614 = vpack.c.b16 %v514, %v510
    %v615 = vpack.c.b16 %v515, %v511
    %v616 = vpack.c.b16 %v516, %v512
    %v617 = vpack.c.b16 %v521, %v517
    %v618 = vpack.c.b16 %v522, %v518
    %v619 = vpack.c.b16 %v523, %v519
    %v620 = vpack.c.b16 %v524, %v520
    %v621 = vpack.c.b16 %v529, %v525
    %v622 = vpack.c.b16 %v530, %v526
    %v623 = vpack.c.b16 %v531, %v527
    %v624 = vpack.c.b16 %v532, %v528
    %v625 = vpack.c.b16 %v537, %v533
    %v626 = vpack.c.b16 %v538, %v534
    %v627 = vpack.c.b16 %v539, %v535
    %v628 = vpack.c.b16 %v540, %v536
    %v629 = vpack.c.b16 %v545, %v541
    %v630 = vpack.c.b16 %v546, %v542
    %v631 = vpack.c.b16 %v547, %v543
    %v632 = vpack.c.b16 %v548, %v544
    %v633 = vpack.c.b16 %v553, %v549
    %v634 = vpack.c.b16 %v554, %v550
    %v635 = vpack.c.b16 %v555, %v551
    %v636 = vpack.c.b16 %v556, %v552
    %v637 = vpack.c.b16 %v561, %v557
    %v638 = vpack.c.b16 %v562, %v558
    %v639 = vpack.c.b16 %v563, %v559
    %v640 = vpack.c.b16 %v564, %v560
    %v641 = vpack.c.b16 %v569, %v565
    %v642 = vpack.c.b16 %v570, %v566
    %v643 = vpack.c.b16 %v571, %v567
    %v644 = vpack.c.b16 %v572, %v568
    %v645 = vpack.c.b16 %v577, %v573
    %v646 = vpack.c.b16 %v578, %v574
    %v647 = vpack.c.b16 %v579, %v575
    %v648 = vpack.c.b16 %v580, %v576
    %v649 = vpack.c.b16 %v585, %v581
    %v650 = vpack.c.b16 %v586, %v582
    %v651 = vpack.c.b16 %v587, %v583
    %v652 = vpack.c.b16 %v588, %v584
    %717 = vmatpush.bf16.msra.mxu0 %v617
    %718 = vmatpush.bf16.msra.mxu0 %v613
    %719 = vmatpush.bf16.msra.mxu0 %v609
    %720 = vmatpush.bf16.msra.mxu0 %v605
    %721 = vmatpush.bf16.msra.mxu0 %v601
    %722 = vmatpush.bf16.msra.mxu0 %v597
    %723 = vmatpush.bf16.msra.mxu0 %v593
    %724 = vmatpush.bf16.msra.mxu0 %v589
    %725 = vmatmul.bf16.gmra.mxu0 %v331
    %v726 = vpop.f32.mrf.mxu0
    %v727 = vadd.f32 0.0, %v726
    %v728 = vpop.f32.mrf.mxu0
    %729 = vdwg.mxu0
    %730 = vmatpush.bf16.msra.mxu0 %v649
    %731 = vmatpush.bf16.msra.mxu0 %v645
    %732 = vmatpush.bf16.msra.mxu0 %v641
    %733 = vmatpush.bf16.msra.mxu0 %v637
    %734 = vmatpush.bf16.msra.mxu0 %v633
    %735 = vmatpush.bf16.msra.mxu0 %v629
    %736 = vmatpush.bf16.msra.mxu0 %v625
    %737 = vmatpush.bf16.msra.mxu0 %v621
    %738 = vmatmul.bf16.gmra.mxu0 %v332
    %v739 = vpop.f32.mrf.mxu0
    %v740 = vadd.f32 %v727, %v739
    %v741 = vpop.f32.mrf.mxu0
    %742 = vdwg.mxu0
    %743 = vmatpush.bf16.msra.mxu0 %v618
    %744 = vmatpush.bf16.msra.mxu0 %v614
    %745 = vmatpush.bf16.msra.mxu0 %v610
    %746 = vmatpush.bf16.msra.mxu0 %v606
    %747 = vmatpush.bf16.msra.mxu0 %v602
    %748 = vmatpush.bf16.msra.mxu0 %v598
    %749 = vmatpush.bf16.msra.mxu0 %v594
    %750 = vmatpush.bf16.msra.mxu0 %v590
    %751 = vmatmul.bf16.gmra.mxu0 %v331
    %v752 = vpop.f32.mrf.mxu0
    %v753 = vadd.f32 0.0, %v752
    %v754 = vpop.f32.mrf.mxu0
    %755 = vdwg.mxu0
    %756 = vmatpush.bf16.msra.mxu0 %v650
    %757 = vmatpush.bf16.msra.mxu0 %v646
    %758 = vmatpush.bf16.msra.mxu0 %v642
    %759 = vmatpush.bf16.msra.mxu0 %v638
    %760 = vmatpush.bf16.msra.mxu0 %v634
    %761 = vmatpush.bf16.msra.mxu0 %v630
    %762 = vmatpush.bf16.msra.mxu0 %v626
    %763 = vmatpush.bf16.msra.mxu0 %v622
    %764 = vmatmul.bf16.gmra.mxu0 %v332
    %v765 = vpop.f32.mrf.mxu0
    %v766 = vadd.f32 %v753, %v765
    %v767 = vpop.f32.mrf.mxu0
    %768 = vdwg.mxu0
    %769 = vmatpush.bf16.msra.mxu0 %v619
    %770 = vmatpush.bf16.msra.mxu0 %v615
    %771 = vmatpush.bf16.msra.mxu0 %v611
    %772 = vmatpush.bf16.msra.mxu0 %v607
    %773 = vmatpush.bf16.msra.mxu0 %v603
    %774 = vmatpush.bf16.msra.mxu0 %v599
    %775 = vmatpush.bf16.msra.mxu0 %v595
    %776 = vmatpush.bf16.msra.mxu0 %v591
    %777 = vmatmul.bf16.gmra.mxu0 %v331
    %v778 = vpop.f32.mrf.mxu0
    %v779 = vadd.f32 0.0, %v778
    %v780 = vpop.f32.mrf.mxu0
    %781 = vdwg.mxu0
    %782 = vmatpush.bf16.msra.mxu0 %v651
    %783 = vmatpush.bf16.msra.mxu0 %v647
    %784 = vmatpush.bf16.msra.mxu0 %v643
    %785 = vmatpush.bf16.msra.mxu0 %v639
    %786 = vmatpush.bf16.msra.mxu0 %v635
    %787 = vmatpush.bf16.msra.mxu0 %v631
    %788 = vmatpush.bf16.msra.mxu0 %v627
    %789 = vmatpush.bf16.msra.mxu0 %v623
    %790 = vmatmul.bf16.gmra.mxu0 %v332
    %v791 = vpop.f32.mrf.mxu0
    %v792 = vadd.f32 %v779, %v791
    %v793 = vpop.f32.mrf.mxu0
    %794 = vdwg.mxu0
    %795 = vmatpush.bf16.msra.mxu0 %v620
    %796 = vmatpush.bf16.msra.mxu0 %v616
    %797 = vmatpush.bf16.msra.mxu0 %v612
    %798 = vmatpush.bf16.msra.mxu0 %v608
    %799 = vmatpush.bf16.msra.mxu0 %v604
    %800 = vmatpush.bf16.msra.mxu0 %v600
    %801 = vmatpush.bf16.msra.mxu0 %v596
    %802 = vmatpush.bf16.msra.mxu0 %v592
    %803 = vmatmul.bf16.gmra.mxu0 %v331
    %v804 = vpop.f32.mrf.mxu0
    %v805 = vadd.f32 0.0, %v804
    %v806 = vpop.f32.mrf.mxu0
    %807 = vdwg.mxu0
    %808 = vmatpush.bf16.msra.mxu0 %v652
    %809 = vmatpush.bf16.msra.mxu0 %v648
    %810 = vmatpush.bf16.msra.mxu0 %v644
    %811 = vmatpush.bf16.msra.mxu0 %v640
    %812 = vmatpush.bf16.msra.mxu0 %v636
    %813 = vmatpush.bf16.msra.mxu0 %v632
    %814 = vmatpush.bf16.msra.mxu0 %v628
    %815 = vmatpush.bf16.msra.mxu0 %v624
    %816 = vmatmul.bf16.gmra.mxu0 %v332
    %v817 = vpop.f32.mrf.mxu0
    %v818 = vadd.f32 %v805, %v817
    %v819 = vpop.f32.mrf.mxu0
    %820 = vdwg.mxu0
    %v821 = vld [vmem:[#allocation10] ss:$2 sm:$0xf]
    %s822 = scalar_lea.vmem [#allocation10], 1
    %v823 = vld [vmem:[%s822] ss:$2 sm:$0xf]
    %v824 = vrot.slane %v740, 4
    %v825 = vadd.f32 %v740, %v824
    %v826 = vrot.slane %v825, 2
    %v827 = vadd.f32 %v825, %v826
    %v828 = vrot.slane %v827, 1
    %v829 = vadd.f32 %v827, %v828
    %v830 = vrot.slane %v766, 4
    %v831 = vadd.f32 %v766, %v830
    %v832 = vrot.slane %v831, 2
    %v833 = vadd.f32 %v831, %v832
    %v834 = vrot.slane %v833, 1
    %v835 = vadd.f32 %v833, %v834
    %v836 = vrot.slane %v792, 4
    %v837 = vadd.f32 %v792, %v836
    %v838 = vrot.slane %v837, 2
    %v839 = vadd.f32 %v837, %v838
    %v840 = vrot.slane %v839, 1
    %v841 = vadd.f32 %v839, %v840
    %v842 = vrot.slane %v818, 4
    %v843 = vadd.f32 %v818, %v842
    %v844 = vrot.slane %v843, 2
    %v845 = vadd.f32 %v843, %v844
    %v846 = vrot.slane %v845, 1
    %v847 = vadd.f32 %v845, %v846
    %v848 = vmul.f32 %v829, %v260
    %v849 = vmul.f32 %v835, %v260
    %v850 = vmul.f32 %v841, %v260
    %v851 = vmul.f32 %v847, %v260
    %v852 = vmul.f32 %v740, %v740
    %v853 = vmul.f32 %v766, %v766
    %v854 = vmul.f32 %v792, %v792
    %v855 = vmul.f32 %v818, %v818
    %v856 = vrot.slane %v852, 4
    %v857 = vadd.f32 %v852, %v856
    %v858 = vrot.slane %v857, 2
    %v859 = vadd.f32 %v857, %v858
    %v860 = vrot.slane %v859, 1
    %v861 = vadd.f32 %v859, %v860
    %v862 = vrot.slane %v853, 4
    %v863 = vadd.f32 %v853, %v862
    %v864 = vrot.slane %v863, 2
    %v865 = vadd.f32 %v863, %v864
    %v866 = vrot.slane %v865, 1
    %v867 = vadd.f32 %v865, %v866
    %v868 = vrot.slane %v854, 4
    %v869 = vadd.f32 %v854, %v868
    %v870 = vrot.slane %v869, 2
    %v871 = vadd.f32 %v869, %v870
    %v872 = vrot.slane %v871, 1
    %v873 = vadd.f32 %v871, %v872
    %v874 = vrot.slane %v855, 4
    %v875 = vadd.f32 %v855, %v874
    %v876 = vrot.slane %v875, 2
    %v877 = vadd.f32 %v875, %v876
    %v878 = vrot.slane %v877, 1
    %v879 = vadd.f32 %v877, %v878
    %v880 = vmul.f32 %v861, %v260
    %v881 = vmul.f32 %v867, %v260
    %v882 = vmul.f32 %v873, %v260
    %v883 = vmul.f32 %v879, %v260
    %v884 = vmul.f32 %v848, %v848
    %v885 = vmul.f32 %v849, %v849
    %v886 = vmul.f32 %v850, %v850
    %v887 = vmul.f32 %v851, %v851
    %v888 = vsub.f32 %v880, %v884
    %v889 = vsub.f32 %v881, %v885
    %v890 = vsub.f32 %v882, %v886
    %v891 = vsub.f32 %v883, %v887
    %v892 = vmax.f32 %v888, 0.0
    %v893 = vmax.f32 %v889, 0.0
    %v894 = vmax.f32 %v890, 0.0
    %v895 = vmax.f32 %v891, 0.0
    %v896 = vsub.f32 %v740, %v848
    %v897 = vsub.f32 %v766, %v849
    %v898 = vsub.f32 %v792, %v850
    %v899 = vsub.f32 %v818, %v851
    %v900 = vadd.f32 %v892, 1e-05
    %v901 = vadd.f32 %v893, 1e-05
    %v902 = vadd.f32 %v894, 1e-05
    %v903 = vadd.f32 %v895, 1e-05
    %v904 = vrsqrt.pop %v900
    %v905 = vmul.f32 %v904, %v900
    %v906 = vmul.f32 %v905, %v904
    %v907 = vmul.f32 0.5, %v906
    %v908 = vsub.f32 1.5, %v907
    %v909 = vmul.f32 %v904, %v908
    %vm910 = vweird.f32 %v900
    %vm911 = vweird.f32 %v904
    %vm912 = vmor %vm910, %vm911
    %v913 = vsel %vm912, %v904, %v909
    %v914 = vrsqrt.pop %v901
    %v915 = vmul.f32 %v914, %v901
    %v916 = vmul.f32 %v915, %v914
    %v917 = vmul.f32 0.5, %v916
    %v918 = vsub.f32 1.5, %v917
    %v919 = vmul.f32 %v914, %v918
    %vm920 = vweird.f32 %v901
    %vm921 = vweird.f32 %v914
    %vm922 = vmor %vm920, %vm921
    %v923 = vsel %vm922, %v914, %v919
    %v924 = vrsqrt.pop %v902
    %v925 = vmul.f32 %v924, %v902
    %v926 = vmul.f32 %v925, %v924
    %v927 = vmul.f32 0.5, %v926
    %v928 = vsub.f32 1.5, %v927
    %v929 = vmul.f32 %v924, %v928
    %vm930 = vweird.f32 %v902
    %vm931 = vweird.f32 %v924
    %vm932 = vmor %vm930, %vm931
    %v933 = vsel %vm932, %v924, %v929
    %v934 = vrsqrt.pop %v903
    %v935 = vmul.f32 %v934, %v903
    %v936 = vmul.f32 %v935, %v934
    %v937 = vmul.f32 0.5, %v936
    %v938 = vsub.f32 1.5, %v937
    %v939 = vmul.f32 %v934, %v938
    %vm940 = vweird.f32 %v903
    %vm941 = vweird.f32 %v934
    %vm942 = vmor %vm940, %vm941
    %v943 = vsel %vm942, %v934, %v939
    %v944 = vmul.f32 %v896, %v913
    %v945 = vmul.f32 %v897, %v923
    %v946 = vmul.f32 %v898, %v933
    %v947 = vmul.f32 %v899, %v943
    %v949 = vperm.slane %v821, 0
    %v950 = vperm.slane %v821, 1
    %v951 = vperm.slane %v821, 2
    %v952 = vperm.slane %v821, 3
    %v957 = vmul.f32 %v944, %v949
    %v958 = vmul.f32 %v945, %v950
    %v959 = vmul.f32 %v946, %v951
    %v960 = vmul.f32 %v947, %v952
    %v962 = vperm.slane %v823, 0
    %v963 = vperm.slane %v823, 1
    %v964 = vperm.slane %v823, 2
    %v965 = vperm.slane %v823, 3
    %v970 = vadd.f32 %v957, %v962
    %v971 = vadd.f32 %v958, %v963
    %v972 = vadd.f32 %v959, %v964
    %v973 = vadd.f32 %v960, %v965
    %vm974 = vcmp.gt.f32.partialorder %v970, 0.0
    %vm975 = vcmp.gt.f32.partialorder %v971, 0.0
    %vm976 = vcmp.gt.f32.partialorder %v972, 0.0
    %vm977 = vcmp.gt.f32.partialorder %v973, 0.0
    %v978 = vmul.f32 %v970, 0.2
    %v979 = vmul.f32 %v971, 0.2
    %v980 = vmul.f32 %v972, 0.2
    %v981 = vmul.f32 %v973, 0.2
    %v982 = vsel %vm974, %v970, %v978
    %v983 = vsel %vm975, %v971, %v979
    %v984 = vsel %vm976, %v972, %v980
    %v985 = vsel %vm977, %v973, %v981
    %v986 = vpack.c.bf16 %v982, %v982
    %v987 = vpack.c.bf16 %v983, %v983
    %v988 = vpack.c.bf16 %v984, %v984
    %v989 = vpack.c.bf16 %v985, %v985
    %v990 = vld [vmem:[#allocation11] sm:$0xf]
    %v991 = vld [vmem:[#allocation11 + $0x4] sm:$0xf]
    %v992 = vld [vmem:[#allocation11 + $0x8] sm:$0xf]
    %v993 = vld [vmem:[#allocation11 + $0xc] sm:$0xf]
    %v994 = vld [vmem:[#allocation11 + $0x10] sm:$0xf]
    %v995 = vld [vmem:[#allocation11 + $0x14] sm:$0xf]
    %v996 = vld [vmem:[#allocation11 + $0x18] sm:$0xf]
    %v997 = vld [vmem:[#allocation11 + $0x1c] sm:$0xf]
    %v998 = vld [vmem:[#allocation11 + $0x20] sm:$0xf]
    %v999 = vld [vmem:[#allocation11 + $0x24] sm:$0xf]
    %v1000 = vld [vmem:[#allocation11 + $0x28] sm:$0xf]
    %v1001 = vld [vmem:[#allocation11 + $0x2c] sm:$0xf]
    %v1002 = vld [vmem:[#allocation11 + $0x30] sm:$0xf]
    %v1003 = vld [vmem:[#allocation11 + $0x34] sm:$0xf]
    %v1004 = vld [vmem:[#allocation11 + $0x38] sm:$0xf]
    %v1005 = vld [vmem:[#allocation11 + $0x3c] sm:$0xf]
    %v1006 = vld [vmem:[#allocation11 + $0x40] sm:$0xf]
    %v1007 = vld [vmem:[#allocation11 + $0x44] sm:$0xf]
    %v1008 = vld [vmem:[#allocation11 + $0x48] sm:$0xf]
    %v1009 = vld [vmem:[#allocation11 + $0x4c] sm:$0xf]
    %v1010 = vld [vmem:[#allocation11 + $0x50] sm:$0xf]
    %v1011 = vld [vmem:[#allocation11 + $0x54] sm:$0xf]
    %v1012 = vld [vmem:[#allocation11 + $0x58] sm:$0xf]
    %v1013 = vld [vmem:[#allocation11 + $0x5c] sm:$0xf]
    %v1014 = vld [vmem:[#allocation11 + $0x60] sm:$0xf]
    %v1015 = vld [vmem:[#allocation11 + $0x64] sm:$0xf]
    %v1016 = vld [vmem:[#allocation11 + $0x68] sm:$0xf]
    %v1017 = vld [vmem:[#allocation11 + $0x6c] sm:$0xf]
    %v1018 = vld [vmem:[#allocation11 + $0x70] sm:$0xf]
    %v1019 = vld [vmem:[#allocation11 + $0x74] sm:$0xf]
    %v1020 = vld [vmem:[#allocation11 + $0x78] sm:$0xf]
    %v1021 = vld [vmem:[#allocation11 + $0x7c] sm:$0xf]
    %v1022 = vld [vmem:[#allocation11 + $0x80] sm:$0xf]
    %v1023 = vld [vmem:[#allocation11 + $0x84] sm:$0xf]
    %v1024 = vld [vmem:[#allocation11 + $0x88] sm:$0xf]
    %v1025 = vld [vmem:[#allocation11 + $0x8c] sm:$0xf]
    %v1026 = vld [vmem:[#allocation11 + $0x90] sm:$0xf]
    %v1027 = vld [vmem:[#allocation11 + $0x94] sm:$0xf]
    %v1028 = vld [vmem:[#allocation11 + $0x98] sm:$0xf]
    %v1029 = vld [vmem:[#allocation11 + $0x9c] sm:$0xf]
    %v1030 = vld [vmem:[#allocation11 + $0xa0] sm:$0xf]
    %v1031 = vld [vmem:[#allocation11 + $0xa4] sm:$0xf]
    %v1032 = vld [vmem:[#allocation11 + $0xa8] sm:$0xf]
    %v1033 = vld [vmem:[#allocation11 + $0xac] sm:$0xf]
    %v1034 = vld [vmem:[#allocation11 + $0xb0] sm:$0xf]
    %v1035 = vld [vmem:[#allocation11 + $0xb4] sm:$0xf]
    %v1036 = vld [vmem:[#allocation11 + $0xb8] sm:$0xf]
    %v1037 = vld [vmem:[#allocation11 + $0xbc] sm:$0xf]
    %v1038 = vld [vmem:[#allocation11 + $0xc0] sm:$0xf]
    %v1039 = vld [vmem:[#allocation11 + $0xc4] sm:$0xf]
    %v1040 = vld [vmem:[#allocation11 + $0xc8] sm:$0xf]
    %v1041 = vld [vmem:[#allocation11 + $0xcc] sm:$0xf]
    %v1042 = vld [vmem:[#allocation11 + $0xd0] sm:$0xf]
    %v1043 = vld [vmem:[#allocation11 + $0xd4] sm:$0xf]
    %v1044 = vld [vmem:[#allocation11 + $0xd8] sm:$0xf]
    %v1045 = vld [vmem:[#allocation11 + $0xdc] sm:$0xf]
    %v1046 = vld [vmem:[#allocation11 + $0xe0] sm:$0xf]
    %v1047 = vld [vmem:[#allocation11 + $0xe4] sm:$0xf]
    %v1048 = vld [vmem:[#allocation11 + $0xe8] sm:$0xf]
    %v1049 = vld [vmem:[#allocation11 + $0xec] sm:$0xf]
    %v1050 = vld [vmem:[#allocation11 + $0xf0] sm:$0xf]
    %v1051 = vld [vmem:[#allocation11 + $0xf4] sm:$0xf]
    %v1052 = vld [vmem:[#allocation11 + $0xf8] sm:$0xf]
    %v1053 = vld [vmem:[#allocation11 + $0xfc] sm:$0xf]
    %v1054 = vld [vmem:[%s6] sm:$0x1]
    %v1056 = vperm.slane %v1054, 0
    %v1122 = vunpack.c.l.b16 %v990
    %v1123 = vunpack.c.l.b16 %v991
    %v1124 = vunpack.c.l.b16 %v992
    %v1125 = vunpack.c.l.b16 %v993
    %v1126 = vunpack.c.l.b16 %v994
    %v1127 = vunpack.c.l.b16 %v995
    %v1128 = vunpack.c.l.b16 %v996
    %v1129 = vunpack.c.l.b16 %v997
    %v1130 = vunpack.c.l.b16 %v998
    %v1131 = vunpack.c.l.b16 %v999
    %v1132 = vunpack.c.l.b16 %v1000
    %v1133 = vunpack.c.l.b16 %v1001
    %v1134 = vunpack.c.l.b16 %v1002
    %v1135 = vunpack.c.l.b16 %v1003
    %v1136 = vunpack.c.l.b16 %v1004
    %v1137 = vunpack.c.l.b16 %v1005
    %v1138 = vunpack.c.l.b16 %v1006
    %v1139 = vunpack.c.l.b16 %v1007
    %v1140 = vunpack.c.l.b16 %v1008
    %v1141 = vunpack.c.l.b16 %v1009
    %v1142 = vunpack.c.l.b16 %v1010
    %v1143 = vunpack.c.l.b16 %v1011
    %v1144 = vunpack.c.l.b16 %v1012
    %v1145 = vunpack.c.l.b16 %v1013
    %v1146 = vunpack.c.l.b16 %v1014
    %v1147 = vunpack.c.l.b16 %v1015
    %v1148 = vunpack.c.l.b16 %v1016
    %v1149 = vunpack.c.l.b16 %v1017
    %v1150 = vunpack.c.l.b16 %v1018
    %v1151 = vunpack.c.l.b16 %v1019
    %v1152 = vunpack.c.l.b16 %v1020
    %v1153 = vunpack.c.l.b16 %v1021
    %v1154 = vunpack.c.l.b16 %v1022
    %v1155 = vunpack.c.l.b16 %v1023
    %v1156 = vunpack.c.l.b16 %v1024
    %v1157 = vunpack.c.l.b16 %v1025
    %v1158 = vunpack.c.l.b16 %v1026
    %v1159 = vunpack.c.l.b16 %v1027
    %v1160 = vunpack.c.l.b16 %v1028
    %v1161 = vunpack.c.l.b16 %v1029
    %v1162 = vunpack.c.l.b16 %v1030
    %v1163 = vunpack.c.l.b16 %v1031
    %v1164 = vunpack.c.l.b16 %v1032
    %v1165 = vunpack.c.l.b16 %v1033
    %v1166 = vunpack.c.l.b16 %v1034
    %v1167 = vunpack.c.l.b16 %v1035
    %v1168 = vunpack.c.l.b16 %v1036
    %v1169 = vunpack.c.l.b16 %v1037
    %v1170 = vunpack.c.l.b16 %v1038
    %v1171 = vunpack.c.l.b16 %v1039
    %v1172 = vunpack.c.l.b16 %v1040
    %v1173 = vunpack.c.l.b16 %v1041
    %v1174 = vunpack.c.l.b16 %v1042
    %v1175 = vunpack.c.l.b16 %v1043
    %v1176 = vunpack.c.l.b16 %v1044
    %v1177 = vunpack.c.l.b16 %v1045
    %v1178 = vunpack.c.l.b16 %v1046
    %v1179 = vunpack.c.l.b16 %v1047
    %v1180 = vunpack.c.l.b16 %v1048
    %v1181 = vunpack.c.l.b16 %v1049
    %v1182 = vunpack.c.l.b16 %v1050
    %v1183 = vunpack.c.l.b16 %v1051
    %v1184 = vunpack.c.l.b16 %v1052
    %v1185 = vunpack.c.l.b16 %v1053
    %v1186 = vpack.c.b16 %v1123, %v1122
    %v1187 = vpack.c.b16 %v1125, %v1124
    %v1188 = vpack.c.b16 %v1127, %v1126
    %v1189 = vpack.c.b16 %v1129, %v1128
    %v1190 = vpack.c.b16 %v1131, %v1130
    %v1191 = vpack.c.b16 %v1133, %v1132
    %v1192 = vpack.c.b16 %v1135, %v1134
    %v1193 = vpack.c.b16 %v1137, %v1136
    %v1194 = vpack.c.b16 %v1139, %v1138
    %v1195 = vpack.c.b16 %v1141, %v1140
    %v1196 = vpack.c.b16 %v1143, %v1142
    %v1197 = vpack.c.b16 %v1145, %v1144
    %v1198 = vpack.c.b16 %v1147, %v1146
    %v1199 = vpack.c.b16 %v1149, %v1148
    %v1200 = vpack.c.b16 %v1151, %v1150
    %v1201 = vpack.c.b16 %v1153, %v1152
    %v1202 = vpack.c.b16 %v1155, %v1154
    %v1203 = vpack.c.b16 %v1157, %v1156
    %v1204 = vpack.c.b16 %v1159, %v1158
    %v1205 = vpack.c.b16 %v1161, %v1160
    %v1206 = vpack.c.b16 %v1163, %v1162
    %v1207 = vpack.c.b16 %v1165, %v1164
    %v1208 = vpack.c.b16 %v1167, %v1166
    %v1209 = vpack.c.b16 %v1169, %v1168
    %v1210 = vpack.c.b16 %v1171, %v1170
    %v1211 = vpack.c.b16 %v1173, %v1172
    %v1212 = vpack.c.b16 %v1175, %v1174
    %v1213 = vpack.c.b16 %v1177, %v1176
    %v1214 = vpack.c.b16 %v1179, %v1178
    %v1215 = vpack.c.b16 %v1181, %v1180
    %v1216 = vpack.c.b16 %v1183, %v1182
    %v1217 = vpack.c.b16 %v1185, %v1184
    %1250 = vmatpush.bf16.msra.mxu0 %v1193
    %1251 = vmatpush.bf16.msra.mxu0 %v1192
    %1252 = vmatpush.bf16.msra.mxu0 %v1191
    %1253 = vmatpush.bf16.msra.mxu0 %v1190
    %1254 = vmatpush.bf16.msra.mxu0 %v1189
    %1255 = vmatpush.bf16.msra.mxu0 %v1188
    %1256 = vmatpush.bf16.msra.mxu0 %v1187
    %1257 = vmatpush.bf16.msra.mxu0 %v1186
    %1258 = vmatmul.bf16.gmra.mxu0 %v986
    %v1259 = vpop.f32.mrf.mxu0
    %v1260 = vadd.f32 %v1056, %v1259
    %v1261 = vpop.f32.mrf.mxu0
    %1262 = vdwg.mxu0
    %1263 = vmatpush.bf16.msra.mxu0 %v1201
    %1264 = vmatpush.bf16.msra.mxu0 %v1200
    %1265 = vmatpush.bf16.msra.mxu0 %v1199
    %1266 = vmatpush.bf16.msra.mxu0 %v1198
    %1267 = vmatpush.bf16.msra.mxu0 %v1197
    %1268 = vmatpush.bf16.msra.mxu0 %v1196
    %1269 = vmatpush.bf16.msra.mxu0 %v1195
    %1270 = vmatpush.bf16.msra.mxu0 %v1194
    %1271 = vmatmul.bf16.gmra.mxu0 %v987
    %v1272 = vpop.f32.mrf.mxu0
    %v1273 = vadd.f32 %v1260, %v1272
    %v1274 = vpop.f32.mrf.mxu0
    %1275 = vdwg.mxu0
    %1276 = vmatpush.bf16.msra.mxu0 %v1209
    %1277 = vmatpush.bf16.msra.mxu0 %v1208
    %1278 = vmatpush.bf16.msra.mxu0 %v1207
    %1279 = vmatpush.bf16.msra.mxu0 %v1206
    %1280 = vmatpush.bf16.msra.mxu0 %v1205
    %1281 = vmatpush.bf16.msra.mxu0 %v1204
    %1282 = vmatpush.bf16.msra.mxu0 %v1203
    %1283 = vmatpush.bf16.msra.mxu0 %v1202
    %1284 = vmatmul.bf16.gmra.mxu0 %v988
    %v1285 = vpop.f32.mrf.mxu0
    %v1286 = vadd.f32 %v1273, %v1285
    %v1287 = vpop.f32.mrf.mxu0
    %1288 = vdwg.mxu0
    %1289 = vmatpush.bf16.msra.mxu0 %v1217
    %1290 = vmatpush.bf16.msra.mxu0 %v1216
    %1291 = vmatpush.bf16.msra.mxu0 %v1215
    %1292 = vmatpush.bf16.msra.mxu0 %v1214
    %1293 = vmatpush.bf16.msra.mxu0 %v1213
    %1294 = vmatpush.bf16.msra.mxu0 %v1212
    %1295 = vmatpush.bf16.msra.mxu0 %v1211
    %1296 = vmatpush.bf16.msra.mxu0 %v1210
    %1297 = vmatmul.bf16.gmra.mxu0 %v989
    %v1298 = vpop.f32.mrf.mxu0
    %v1299 = vadd.f32 %v1286, %v1298
    %v1300 = vpop.f32.mrf.mxu0
    %1301 = vdwg.mxu0
    %v1302 = vtanh.pop %v1299
    %1303 = vst [vmem:[#allocation13] sm:$0xff] %v1302
    // Predicated region
    $region54: #{tpu_custom_call.1} parent=1 // pred_check
      _
    $region55: #{tpu_custom_call.1} parent=1 // pred_check_branch
      %1305 = sbr.rel (0) target = $region57
    $region56: #{tpu_custom_call.1} parent=1 // pred_region
      %1307 = vsyncadd [#allocation4], 0
      %s1309 = sshll.u32 [#allocation13], 4
      %s1310 = int_to_ptr.vmem [resolvable:$true] %s1309
      %s1311 = sshll.u32 %s7, 4
      %s1312 = int_to_ptr.hbm [resolvable:$true] %s1311
      %1314 = dma.vmem_to_hbm [thread:$0]  %s1310, 128, %s1312, [#allocation4]
    $region57: #{tpu_custom_call.1} parent=1 // pred_fallthru
      _
    // Predicated region
    $region58: #{tpu_custom_call.1} parent=1 // pred_check
      _
    $region59: #{tpu_custom_call.1} parent=1 // pred_check_branch
      %1316 = sbr.rel (0) target = $region61
    $region60: #{tpu_custom_call.1} parent=1 // pred_region
      %1318 = dma.done [#allocation4], 128
    $region61: #{tpu_custom_call.1} parent=1 // pred_fallthru
      _
    %1319 = vsyncpa [#allocation3], 1
    %1320 = vsyncpa [#allocation6], 1
    %1321 = vsyncpa [#allocation9], 1
    %1322 = vsyncpa [#allocation12], 1
    %1323 = vsyncpa [#allocation4], 1

</llo_original>
